<compile_context>
chip_gen: v7x
topology: tpu7x:2x2x1
jax: 0.10.0
libtpu: 0.0.40
codegen_flags: <defaults>
</compile_context>

<pallas_src>
import math

import jax
import jax.numpy as jnp
import numpy as np
from jax.experimental import pallas as pl
from jax.experimental.pallas import tpu as pltpu


# ----------------------------- Pallas kernel ---------------------------------


def _add_pe_kernel(x_ref, pe_ref, out_ref):
    # x_ref:  (block_b, block_rows, lanes)
    # pe_ref: (block_rows, lanes)  -> broadcasts over the batch dim
    out_ref[...] = x_ref[...] + pe_ref[...]


# ----------------------------- helpers ----------------------------------------


def _vmem_capacity_bytes():
    """Best-effort per-core VMEM capacity; conservative fallback (v7x: 64 MiB)."""
    try:
        get_info = getattr(pltpu, "get_tpu_info", None)
        if get_info is not None:
            cap = getattr(get_info(), "vmem_capacity_bytes", None)
            if cap:
                return int(cap)
    except Exception:
        pass
    return 64 * 2 ** 20


def _pick_block_rows(rows, per_row_bytes, target_bytes):
    """Largest divisor of `rows` that is a multiple of 8 and fits target_bytes."""
    if rows % 8 != 0:
        return rows  # full extent is the only legal non-multiple-of-8 choice
    best = 8
    r = 8
    while r <= rows:
        if rows % r == 0 and r * per_row_bytes <= target_bytes:
            best = r
        r += 8
    return best


# ----------------------------- wrapper ----------------------------------------


def positional_encoding_forward(x, pe_full, *, block_rows=None,
                                target_block_bytes=None):
    """Computes x + pe[:, :S, :] with a single fused Pallas kernel.

    x:        (B, S, H) activations (f32 or bf16)
    pe_full:  (max_len, H) precomputed sin/cos table
    block_rows: optional explicit row tile (in the lane-dense row space); must
              evenly divide the row count and be a multiple of 8 (or equal it).
    target_block_bytes: per-grid-step byte budget for the x block
              (default ~1-4 MiB, derived from VMEM capacity).
    """
    B, S, H = x.shape
    if pe_full.shape[0] < S:
        raise ValueError(f"max_len={pe_full.shape[0]} < seq_len={S}")
    if pe_full.shape[1] != H:
        raise ValueError(f"pe hidden dim {pe_full.shape[1]} != x hidden dim {H}")

    # Static slice of the table, dtype-matched to the activations.
    pe = pe_full[:S, :].astype(x.dtype)

    # Lane-dense repack: if H is not a multiple of 128 but S*H is, present the
    # data as (rows, 128) slabs -> unmasked full-width vector stores.  The add
    # is elementwise and pe's batch-broadcast is unchanged by this reshape.
    if H % 128 != 0 and (S * H) % 128 == 0:
        lanes = 128
        rows = (S * H) // 128
    else:
        lanes = H
        rows = S
    x_k = x.reshape(B, rows, lanes)
    pe_k = pe.reshape(rows, lanes)

    itemsize = jnp.dtype(x.dtype).itemsize
    vmem_cap = _vmem_capacity_bytes()
    if target_block_bytes is None:
        # ~1-4 MiB per step: big enough to amortize per-step overhead and reach
        # the HBM roofline, small enough that 2 bufs x (x + out) + pe stays well
        # inside v7x's 64 MiB VMEM (and v5e's 16 MiB scoped default).
        target_block_bytes = max(1 * 2 ** 20, min(4 * 2 ** 20, vmem_cap // 32))

    # Keep the whole batch in one block if even an 8-row tile fits the budget;
    # otherwise move batch into the grid as an independent parallel axis.
    if B * lanes * itemsize * min(rows, 8) <= target_block_bytes:
        block_b = B
    else:
        block_b = 1

    if block_rows is None:
        block_rows = _pick_block_rows(rows, block_b * lanes * itemsize,
                                      target_block_bytes)
    else:
        if rows % block_rows != 0:
            raise ValueError(
                f"block_rows={block_rows} must evenly divide rows={rows}")
        if block_rows % 8 != 0 and block_rows != rows:
            raise ValueError(
                f"block_rows={block_rows} must be a multiple of 8 "
                f"(or equal to rows={rows})")

    grid = (B // block_b, rows // block_rows)

    out = pl.pallas_call(
        _add_pe_kernel,
        out_shape=jax.ShapeDtypeStruct((B, rows, lanes), x.dtype),
        grid=grid,
        in_specs=[
            pl.BlockSpec((block_b, block_rows, lanes), lambda b, r: (b, r, 0)),
            pl.BlockSpec((block_rows, lanes), lambda b, r: (r, 0)),
        ],
        out_specs=pl.BlockSpec((block_b, block_rows, lanes),
                               lambda b, r: (b, r, 0)),
        compiler_params=pltpu.CompilerParams(
            # No accumulator: every tile independent -> shardable across both
            # TensorCores on v7x; measured neutral on single-core v5e/v6e.
            dimension_semantics=("parallel", "parallel"),
            # Raise the scoped VMEM limit where physical VMEM allows (v5e/v6e
            # 128 MiB -> 64 MiB limit); clamp to the default on v7x (64 MiB).
            vmem_limit_bytes=int(min(64 * 2 ** 20,
                                     max(32 * 2 ** 20, vmem_cap // 2))),
        ),
    )(x_k, pe_k)

    return out.reshape(B, S, H)


# ----------------------------- pe table construction --------------------------


def make_positional_encoding(d_model, max_len):
    # Mirrors the PyTorch constructor exactly.
    position = np.arange(0, max_len, dtype=np.float32)[:, None]
    div_term = np.exp(
        np.arange(0, d_model, 2, dtype=np.float32)
        * (-math.log(10000.0) / d_model))
    pe = np.zeros((max_len, d_model), dtype=np.float32)
    pe[:, 0::2] = np.sin(position * div_term)
    pe[:, 1::2] = np.cos(position * div_term)
    return jnp.asarray(pe)


# ----------------------------- main --------------------------------------------


if __name__ == "__main__":
    key = jax.random.PRNGKey(0)

    # --- test 1: spec-sized toy shape (exercises the lane-dense repack path) ---
    B, S, D_MODEL, MAX_LEN = 2, 8, 32, 303
    x = jax.random.normal(key, (B, S, D_MODEL), jnp.float32)
    pe_full = make_positional_encoding(D_MODEL, MAX_LEN)

    out = jax.block_until_ready(positional_encoding_forward(x, pe_full))
    ref = x + pe_full[None, :S, :]
    np.testing.assert_allclose(np.asarray(out), np.asarray(ref),
                               rtol=1e-6, atol=1e-6)

    # --- test 2: larger shape with an explicit multi-step grid (pipelined) ----
    B2, S2, H2 = 2, 256, 128
    x2 = jax.random.normal(jax.random.PRNGKey(1), (B2, S2, H2), jnp.float32)
    pe_full2 = make_positional_encoding(H2, 512)
    out2 = jax.block_until_ready(
        positional_encoding_forward(x2, pe_full2, block_rows=64))
    ref2 = x2 + pe_full2[None, :S2, :]
    np.testing.assert_allclose(np.asarray(out2), np.asarray(ref2),
                               rtol=1e-6, atol=1e-6)

    # --- test 3: bf16 activations (pe cast host-side, no in-kernel promote) ---
    x3 = x.astype(jnp.bfloat16)
    out3 = jax.block_until_ready(positional_encoding_forward(x3, pe_full))
    ref3 = x3 + pe_full[None, :S, :].astype(jnp.bfloat16)
    np.testing.assert_allclose(np.asarray(out3, dtype=np.float32),
                               np.asarray(ref3, dtype=np.float32),
                               rtol=2e-2, atol=2e-2)

    print("KERNEL_OK")
</pallas_src>

<mosaic_0001>
module attributes {stable_mosaic.version = 11 : i64} {
  func.func @_add_pe_kernel(%arg0: i32, %arg1: i32, %arg2: memref<2x2x128xf32, #tpu.memory_space<vmem>>, %arg3: memref<2x128xf32, #tpu.memory_space<vmem>>, %arg4: memref<2x2x128xf32, #tpu.memory_space<vmem>>) attributes {dimension_semantics = [#tpu.dimension_semantics<parallel>, #tpu.dimension_semantics<parallel>], iteration_bounds = array<i64: 1, 1>, scalar_prefetch = 0 : i64, scratch_operands = 0 : i64, tpu.core_type = #tpu.core_type<tc>, window_params = [{transform_indices = @transform_0, window_bounds = array<i64: 2, 2, 128>}, {transform_indices = @transform_1, window_bounds = array<i64: 2, 128>}, {transform_indices = @transform_2, window_bounds = array<i64: 2, 2, 128>}]} {
    %c0 = arith.constant 0 : index
    %c0_0 = arith.constant 0 : index
    %c0_1 = arith.constant 0 : index
    %0 = vector.load %arg2[%c0, %c0_0, %c0_1] : memref<2x2x128xf32, #tpu.memory_space<vmem>>, vector<2x2x128xf32>
    %c0_2 = arith.constant 0 : index
    %c0_3 = arith.constant 0 : index
    %1 = vector.load %arg3[%c0_2, %c0_3] : memref<2x128xf32, #tpu.memory_space<vmem>>, vector<2x128xf32>
    %2 = vector.shape_cast %1 : vector<2x128xf32> to vector<1x2x128xf32>
    %3 = vector.broadcast %2 : vector<1x2x128xf32> to vector<2x2x128xf32>
    %4 = arith.addf %0, %3 : vector<2x2x128xf32>
    %c0_4 = arith.constant 0 : index
    %c0_5 = arith.constant 0 : index
    %c0_6 = arith.constant 0 : index
    %5 = vector.load %arg4[%c0_4, %c0_5, %c0_6] : memref<2x2x128xf32, #tpu.memory_space<vmem>>, vector<2x2x128xf32>
    tpu.vector_store %arg4[%c0_4, %c0_5, %c0_6], %4 {strides = array<i32>} : memref<2x2x128xf32, #tpu.memory_space<vmem>>, vector<2x2x128xf32>,
    return
  }
  func.func @transform_0(%arg0: i32, %arg1: i32) -> (i32, i32, i32) {
    %c0_i32 = arith.constant 0 : i32
    %c0_i32_0 = arith.constant 0 : i32
    return %arg0, %arg1, %c0_i32 : i32, i32, i32
  }
  func.func @transform_1(%arg0: i32, %arg1: i32) -> (i32, i32) {
    %c0_i32 = arith.constant 0 : i32
    %c0_i32_0 = arith.constant 0 : i32
    return %arg1, %c0_i32 : i32, i32
  }
  func.func @transform_2(%arg0: i32, %arg1: i32) -> (i32, i32, i32) {
    %c0_i32 = arith.constant 0 : i32
    %c0_i32_0 = arith.constant 0 : i32
    return %arg0, %arg1, %c0_i32 : i32, i32, i32
  }
}

</mosaic_0001>

<llo_original>
// kernel: tpu_custom_call.1
$region0: #{tpu_custom_call.1}
  #allocation0 [shape = 'u32[]', space=smem, size = 0x4, offset = 0x4, fixed_abs, tag = 'smem constant byte address 0x4 - core index']
  #allocation1 [shape = 'u32[144,128]{1,0:T(1,128)}', space=vmem, size = 0x12000, scoped, tag = 'internal scratch']
  %s0 = inlined_call_operand.hbm [shape: f32[2,2,128], index: 0, kind: input, shape index: {}]
  %s1 = inlined_call_operand.vmem [shape: f32[2,128], index: 1, kind: input, shape index: {}]
  %s2 = inlined_call_operand.hbm [shape: f32[2,2,128], index: 2, kind: output, shape index: {}]
  %s3 = sld [smem:[#allocation0]]
  $region22: #{tpu_custom_call.1} parent=0
    _
  %s5 = ssub.s32 1, %s3
  %s6 = scalar_select 0, %s5, %s3
  $region1: #{tpu_custom_call.1} parent=0
    #allocation2 [shape = 'u8[2048]{0}', space=vmem, size = 0x800, scoped, tag = 'input window, operand 0, single buffered']
    #allocation3 [shape = 's32[1]{0}', space=sflag, size = 0x4, scoped, tag = 'scoped memory for tpu_custom_call.1']
    #allocation4 [shape = 's32[1]{0}', space=sflag, size = 0x4, scoped, tag = 'scoped memory for tpu_custom_call.1']
    #allocation5 [shape = 'u8[2048]{0}', space=vmem, size = 0x800, scoped, tag = 'output window, operand 0, single buffered']
    %7 = vsyncpa [#allocation3], 0
    %8 = vsyncpa [#allocation4], 0
    // Predicated region
    $region2: #{tpu_custom_call.1} parent=1 // pred_check
      _
    $region3: #{tpu_custom_call.1} parent=1 // pred_check_branch
      %10 = sbr.rel (0) target = $region5
    $region4: #{tpu_custom_call.1} parent=1 // pred_region
      %s12 = ssub.s32 64, 64
      %13 = vsyncadd [#allocation3], %s12
      %s14 = sshll.u32 [#allocation2], 4
      %s15 = int_to_ptr.vmem [resolvable:$true] %s14
      %20 = dma.hbm_to_vmem [thread:$0]  %s0, 64, %s15, [#allocation3], 32, 32, 2
    $region5: #{tpu_custom_call.1} parent=1 // pred_fallthru
      _
    // Predicated region
    $region6: #{tpu_custom_call.1} parent=1 // pred_check
      _
    $region7: #{tpu_custom_call.1} parent=1 // pred_check_branch
      %22 = sbr.rel (0) target = $region9
    $region8: #{tpu_custom_call.1} parent=1 // pred_region
      _
    $region9: #{tpu_custom_call.1} parent=1 // pred_fallthru
      _
    // Predicated region
    $region10: #{tpu_custom_call.1} parent=1 // pred_check
      _
    $region11: #{tpu_custom_call.1} parent=1 // pred_check_branch
      %24 = sbr.rel (0) target = $region13
    $region12: #{tpu_custom_call.1} parent=1 // pred_region
      %25 = dma.done [#allocation3], 64
    $region13: #{tpu_custom_call.1} parent=1 // pred_fallthru
      _
    %v26 = vld [vmem:[#allocation2] sm:$0x3]
    %v27 = vld [vmem:[#allocation2 + $0x2] sm:$0x3]
    %v28 = vld [vmem:[%s1] sm:$0x3]
    %v29 = vadd.f32 %v26, %v28
    %v30 = vadd.f32 %v27, %v28
    %31 = vst [vmem:[#allocation5] sm:$0x3] %v29
    %32 = vst [vmem:[#allocation5 + $0x2] sm:$0x3] %v30
    // Predicated region
    $region14: #{tpu_custom_call.1} parent=1 // pred_check
      _
    $region15: #{tpu_custom_call.1} parent=1 // pred_check_branch
      %34 = sbr.rel (0) target = $region17
    $region16: #{tpu_custom_call.1} parent=1 // pred_region
      %s36 = ssub.s32 64, 64
      %37 = vsyncadd [#allocation4], %s36
      %s38 = sshll.u32 [#allocation5], 4
      %s39 = int_to_ptr.vmem [resolvable:$true] %s38
      %44 = dma.vmem_to_hbm [thread:$0]  %s39, 64, %s2, [#allocation4], 32, 32, 2
    $region17: #{tpu_custom_call.1} parent=1 // pred_fallthru
      _
    // Predicated region
    $region18: #{tpu_custom_call.1} parent=1 // pred_check
      _
    $region19: #{tpu_custom_call.1} parent=1 // pred_check_branch
      %46 = sbr.rel (0) target = $region21
    $region20: #{tpu_custom_call.1} parent=1 // pred_region
      %47 = dma.done [#allocation4], 64
    $region21: #{tpu_custom_call.1} parent=1 // pred_fallthru
      _
    %48 = vsyncpa [#allocation3], 1
    %49 = vsyncpa [#allocation4], 1

</llo_original>
